<compile_context>
chip_gen: v7x
topology: tpu7x:2x2x1
jax: 0.10.0
libtpu: 0.0.40
codegen_flags: <defaults>
</compile_context>

<pallas_src>
import jax
import jax.numpy as jnp
from jax import lax
from jax.experimental import pallas as pl
from jax.experimental.pallas import tpu as pltpu

# ----------------------------- static layout ---------------------------------
_N1 = 17 * 17        # conv1 flat spatial (17x17)
_N1_PAD = 384        # conv1 flat spatial padded to a lane multiple
_WIDE = 256          # conv2 "wide" spatial layout, padded (14*17 = 238 real cols)
_OFFS = tuple(ki * 17 + kj for ki in range(4) for kj in range(4))  # 16 shifts

# Invariants that keep the padding / garbage-column scheme exact:
#  * real fc1 columns (v<14, u<14) read h1 columns <= max_off + 13*17+13 = 288,
#    i.e. never the padded h1 columns (>= 289);
#  * every shifted 256-wide window stays inside the 384-wide padded h1;
#  * garbage wide columns (u>=14 or j>=238) get zero fc1 weights in pack_params.
assert _OFFS[-1] + (13 * 17 + 13) == _N1 - 1
assert _OFFS[-1] + _WIDE <= _N1_PAD


# ----------------------------- fused Pallas kernel ----------------------------

def _prim_big_kernel(p1t_ref, wconv_ref, bconv_ref, bfc_ref, wf2t_ref,
                     wf1_hbm_ref, o_ref, wf1_vmem, dma_sem):
    # Kick off the 256 KiB fc1 weight fetch so it overlaps conv1/conv2 compute.
    fc1_copy = pltpu.make_async_copy(wf1_hbm_ref, wf1_vmem, dma_sem)
    fc1_copy.start()

    # conv1: relu( (8,64) @ (64,384) + b1 ) -> (8,384) f32, channel-major,
    # lane-dense (column = y*17 + x; columns >= 289 are padding -> relu(b1)).
    h1 = jnp.dot(wconv_ref[0:8, 0:64], p1t_ref[...],
                 preferred_element_type=jnp.float32)
    h1 = jnp.maximum(h1 + bconv_ref[0:8, :], 0.0)                 # (8, 384)

    # conv2 as ONE GEMM: stack the 16 kernel-position-shifted windows of h1
    # along sublanes (each piece is a full 8-row f32 tile -> aligned concat),
    # then (4,128) @ (128,256).  Wide column j = v*17 + u; u>=14 and j>=238 are
    # garbage and get zero fc1 weights.
    rhs = jnp.concatenate([h1[:, off:off + _WIDE] for off in _OFFS],
                          axis=0).astype(jnp.bfloat16)            # (128, 256)
    h2 = jnp.dot(wconv_ref[8:12, :], rhs, preferred_element_type=jnp.float32)
    h2 = jnp.maximum(h2 + bconv_ref[8:12, :], 0.0)                # (4, 256)

    # Channel-major flatten to (1,1024) (vreg-aligned lane concat), then fc1 as
    # ONE (1,1024) @ (1024,128) GEMM against the async-copied weight.
    h2f = jnp.concatenate([h2[c:c + 1, :] for c in range(4)],
                          axis=1).astype(jnp.bfloat16)            # (1, 1024)
    fc1_copy.wait()
    y1 = jnp.dot(h2f, wf1_vmem[...], preferred_element_type=jnp.float32)
    y1 = jnp.maximum(y1 + bfc_ref[0:1, :], 0.0)                   # (1, 128)

    # fc2 (128 output lanes; padded logits carry -1e30 bias) + softmax.
    logits = jnp.dot(y1.astype(jnp.bfloat16), wf2t_ref[...],
                     preferred_element_type=jnp.float32)
    logits = logits + bfc_ref[1:2, :]                             # (1, 128)
    m = jnp.max(logits, axis=-1, keepdims=True)
    e = jnp.exp(logits - m)
    s = jnp.sum(e, axis=-1, keepdims=True)
    o_ref[...] = (e * pl.reciprocal(s, approx=True)).astype(o_ref.dtype)


# ------------------------- one-time parameter packing -------------------------

def pack_params(params):
    """Repack PyTorch-layout params ONCE (outside the jitted per-call path)."""
    w1, b1, w2, b2, wf1, bf1, wf2, bf2 = params

    # conv weights stacked into one lane-dense (12,128) bf16 array:
    #   rows 0:8  = conv1 OIHW flat (cols 0:64 real, 64:128 zero)
    #   rows 8:12 = conv2 stacked per kernel position: cols 8p+ic = w2[:,ic,ki,kj]
    w1f = jnp.pad(w1.reshape(8, 64), ((0, 0), (0, 64)))
    w2r = jnp.transpose(w2, (2, 3, 0, 1)).reshape(16, 4, 8)      # p = ki*4+kj
    w2s = jnp.transpose(w2r, (1, 0, 2)).reshape(4, 128)
    wconv = jnp.concatenate([w1f, w2s], axis=0).astype(jnp.bfloat16)   # (12,128)
    bconv = jnp.concatenate([b1, b2]).reshape(12, 1).astype(jnp.float32)

    # fc1 weight remapped to the padded wide conv2 layout and flattened to
    # (1024,128): row c*256 + v*17 + u = wf1[:, c*196 + v*14 + u]; zero elsewhere.
    w = jnp.pad(wf1.reshape(128, 4, 14, 14), ((0, 0), (0, 0), (0, 0), (0, 3)))
    w = jnp.pad(w.reshape(128, 4, 238), ((0, 0), (0, 0), (0, _WIDE - 238)))
    wf1s = jnp.transpose(w, (1, 2, 0)).reshape(4 * _WIDE, 128).astype(jnp.bfloat16)

    # fc2 transposed + padded to 128 lanes; padded logits biased to -1e30 so
    # they vanish in the softmax.
    wf2t = jnp.pad(wf2.T, ((0, 0), (0, 124))).astype(jnp.bfloat16)     # (128,128)
    bfc = jnp.stack([bf1, jnp.pad(bf2, (0, 124), constant_values=-1e30)]
                    ).astype(jnp.float32)                              # (2,128)
    return wconv, bconv, bfc, wf2t, wf1s


# --------------------------------- wrapper ------------------------------------

def prim_big_forward(x, packed):
    """x: (1,1,40,40) float32 NCHW. packed: output of pack_params(). -> (4,)."""
    wconv, bconv, bfc, wf2t, wf1s = packed

    # conv1 im2col patches (single XLA op), transposed + lane-padded + bf16:
    # (1,64,17,17) -> (64,289) -> (64,384).  Row = ki*8+kj (matches OIHW flat),
    # column = y*17 + x.
    # TODO(synk): in-kernel stride-2 im2col via pl.ds lane gathers was skipped
    # (64 strided sub-lane gathers would be slower than this one patches op).
    p1 = lax.conv_general_dilated_patches(
        x, filter_shape=(8, 8), window_strides=(2, 2), padding='VALID')
    p1t = jnp.pad(p1.reshape(64, _N1),
                  ((0, 0), (0, _N1_PAD - _N1))).astype(jnp.bfloat16)

    vmem = pl.BlockSpec(memory_space=pltpu.MemorySpace.VMEM)
    out = pl.pallas_call(
        _prim_big_kernel,
        out_shape=jax.ShapeDtypeStruct((1, 128), jnp.float32),
        in_specs=[vmem, vmem, vmem, vmem, vmem,
                  pl.BlockSpec(memory_space=pl.ANY)],       # fc1 weight in HBM
        out_specs=vmem,
        scratch_shapes=[pltpu.VMEM((4 * _WIDE, 128), jnp.bfloat16),
                        pltpu.SemaphoreType.DMA],
    )(p1t, wconv, bconv, bfc, wf2t, wf1s)
    return out[0, :4]


def reference_forward(x, params):
    """Pure-JAX reference mirroring the PyTorch module."""
    w1, b1, w2, b2, wf1, bf1, wf2, bf2 = params
    dn = ('NCHW', 'OIHW', 'NCHW')
    h = lax.conv_general_dilated(x, w1, (2, 2), 'VALID', dimension_numbers=dn)
    h = jnp.maximum(h + b1.reshape(1, -1, 1, 1), 0.0)
    h = lax.conv_general_dilated(h, w2, (1, 1), 'VALID', dimension_numbers=dn)
    h = jnp.maximum(h + b2.reshape(1, -1, 1, 1), 0.0)
    flat = h.reshape(-1)
    y = jnp.maximum(flat @ wf1.T + bf1, 0.0)
    y = y @ wf2.T + bf2
    return jax.nn.softmax(y, axis=0)


# ---------------------------------- main --------------------------------------

if __name__ == "__main__":
    key = jax.random.PRNGKey(0)
    ks = jax.random.split(key, 9)
    # Deterministic synthetic parameters (shapes from PrimBig.__init__).
    params = (
        jax.random.normal(ks[0], (8, 1, 8, 8), jnp.float32) * 0.05,   # conv1 W
        jax.random.normal(ks[1], (8,), jnp.float32) * 0.05,           # conv1 b
        jax.random.normal(ks[2], (4, 8, 4, 4), jnp.float32) * 0.05,   # conv2 W
        jax.random.normal(ks[3], (4,), jnp.float32) * 0.05,           # conv2 b
        jax.random.normal(ks[4], (128, 784), jnp.float32) * 0.05,     # fc1 W
        jax.random.normal(ks[5], (128,), jnp.float32) * 0.05,         # fc1 b
        jax.random.normal(ks[6], (4, 128), jnp.float32) * 0.05,       # fc2 W
        jax.random.normal(ks[7], (4,), jnp.float32) * 0.05,           # fc2 b
    )
    # fc1 expects 4*14*14 features -> input must be (1, 1, 40, 40).
    x = jax.random.normal(ks[8], (1, 1, 40, 40), jnp.float32)

    packed = pack_params(params)            # one-time, outside the jitted path
    fwd = jax.jit(prim_big_forward)
    out = jax.block_until_ready(fwd(x, packed))
    ref = jax.block_until_ready(reference_forward(x, params))

    assert out.shape == (4,)
    assert jnp.allclose(jnp.sum(out), 1.0, atol=1e-3)          # approx-recip norm
    assert jnp.allclose(out, ref, atol=2e-3, rtol=2e-2), (out, ref)
    print("KERNEL_OK")
</pallas_src>

<mosaic_0001>
module attributes {stable_mosaic.version = 11 : i64} {
  func.func @_prim_big_kernel(%arg0: memref<64x384xbf16, #tpu.memory_space<vmem>>, %arg1: memref<12x128xbf16, #tpu.memory_space<vmem>>, %arg2: memref<12x1xf32, #tpu.memory_space<vmem>>, %arg3: memref<2x128xf32, #tpu.memory_space<vmem>>, %arg4: memref<128x128xbf16, #tpu.memory_space<vmem>>, %arg5: memref<1024x128xbf16, #tpu.memory_space<any>>, %arg6: memref<1x128xf32, #tpu.memory_space<vmem>>, %arg7: memref<1024x128xbf16, #tpu.memory_space<vmem>>, %arg8: memref<!tpu.dma_semaphore, #tpu.memory_space<semaphore_mem>>) attributes {dimension_semantics = [], scalar_prefetch = 0 : i64, scratch_operands = 2 : i64, tpu.core_type = #tpu.core_type<tc>} {
    tpu.enqueue_dma source(%arg5 : memref<1024x128xbf16, #tpu.memory_space<any>>) target(%arg7 : memref<1024x128xbf16, #tpu.memory_space<vmem>>) target_semaphore(%arg8 : memref<!tpu.dma_semaphore, #tpu.memory_space<semaphore_mem>>)
    %c0 = arith.constant 0 : index
    %c0_0 = arith.constant 0 : index
    %0 = vector.load %arg1[%c0, %c0_0] : memref<12x128xbf16, #tpu.memory_space<vmem>>, vector<8x64xbf16>
    %c0_1 = arith.constant 0 : index
    %c0_2 = arith.constant 0 : index
    %1 = vector.load %arg0[%c0_1, %c0_2] : memref<64x384xbf16, #tpu.memory_space<vmem>>, vector<64x384xbf16>
    %cst = arith.constant dense<0.000000e+00> : vector<8x384xf32>
    %2 = tpu.matmul %0, %1, %cst {dimension_numbers = #tpu.dot_dimension_numbers<[1], [0], [0], [1], [0, 0, 1, 1], [], []>} : vector<8x64xbf16>, vector<64x384xbf16>, vector<8x384xf32> -> vector<8x384xf32>
    %c0_3 = arith.constant 0 : index
    %c0_4 = arith.constant 0 : index
    %3 = vector.load %arg2[%c0_3, %c0_4] : memref<12x1xf32, #tpu.memory_space<vmem>>, vector<8x1xf32>
    %4 = vector.broadcast %3 : vector<8x1xf32> to vector<8x384xf32>
    %5 = arith.addf %2, %4 : vector<8x384xf32>
    %cst_5 = arith.constant 0.000000e+00 : f32
    %6 = vector.broadcast %cst_5 : f32 to vector<8x384xf32>
    %7 = arith.maximumf %5, %6 : vector<8x384xf32>
    %8 = vector.extract_strided_slice %7 {offsets = [0, 0], sizes = [8, 256], strides = [1, 1]} : vector<8x384xf32> to vector<8x256xf32>
    %9 = vector.extract_strided_slice %7 {offsets = [0, 1], sizes = [8, 256], strides = [1, 1]} : vector<8x384xf32> to vector<8x256xf32>
    %10 = vector.extract_strided_slice %7 {offsets = [0, 2], sizes = [8, 256], strides = [1, 1]} : vector<8x384xf32> to vector<8x256xf32>
    %11 = vector.extract_strided_slice %7 {offsets = [0, 3], sizes = [8, 256], strides = [1, 1]} : vector<8x384xf32> to vector<8x256xf32>
    %12 = vector.extract_strided_slice %7 {offsets = [0, 17], sizes = [8, 256], strides = [1, 1]} : vector<8x384xf32> to vector<8x256xf32>
    %13 = vector.extract_strided_slice %7 {offsets = [0, 18], sizes = [8, 256], strides = [1, 1]} : vector<8x384xf32> to vector<8x256xf32>
    %14 = vector.extract_strided_slice %7 {offsets = [0, 19], sizes = [8, 256], strides = [1, 1]} : vector<8x384xf32> to vector<8x256xf32>
    %15 = vector.extract_strided_slice %7 {offsets = [0, 20], sizes = [8, 256], strides = [1, 1]} : vector<8x384xf32> to vector<8x256xf32>
    %16 = vector.extract_strided_slice %7 {offsets = [0, 34], sizes = [8, 256], strides = [1, 1]} : vector<8x384xf32> to vector<8x256xf32>
    %17 = vector.extract_strided_slice %7 {offsets = [0, 35], sizes = [8, 256], strides = [1, 1]} : vector<8x384xf32> to vector<8x256xf32>
    %18 = vector.extract_strided_slice %7 {offsets = [0, 36], sizes = [8, 256], strides = [1, 1]} : vector<8x384xf32> to vector<8x256xf32>
    %19 = vector.extract_strided_slice %7 {offsets = [0, 37], sizes = [8, 256], strides = [1, 1]} : vector<8x384xf32> to vector<8x256xf32>
    %20 = vector.extract_strided_slice %7 {offsets = [0, 51], sizes = [8, 256], strides = [1, 1]} : vector<8x384xf32> to vector<8x256xf32>
    %21 = vector.extract_strided_slice %7 {offsets = [0, 52], sizes = [8, 256], strides = [1, 1]} : vector<8x384xf32> to vector<8x256xf32>
    %22 = vector.extract_strided_slice %7 {offsets = [0, 53], sizes = [8, 256], strides = [1, 1]} : vector<8x384xf32> to vector<8x256xf32>
    %23 = vector.extract_strided_slice %7 {offsets = [0, 54], sizes = [8, 256], strides = [1, 1]} : vector<8x384xf32> to vector<8x256xf32>
    %24 = tpu.concatenate %8, %9, %10, %11, %12, %13, %14, %15, %16, %17, %18, %19, %20, %21, %22, %23 in 0 : vector<8x256xf32>, vector<8x256xf32>, vector<8x256xf32>, vector<8x256xf32>, vector<8x256xf32>, vector<8x256xf32>, vector<8x256xf32>, vector<8x256xf32>, vector<8x256xf32>, vector<8x256xf32>, vector<8x256xf32>, vector<8x256xf32>, vector<8x256xf32>, vector<8x256xf32>, vector<8x256xf32>, vector<8x256xf32> -> vector<128x256xf32>
    %25 = arith.truncf %24 : vector<128x256xf32> to vector<128x256xbf16>
    %c8 = arith.constant 8 : index
    %c0_6 = arith.constant 0 : index
    %26 = vector.load %arg1[%c8, %c0_6] : memref<12x128xbf16, #tpu.memory_space<vmem>>, vector<4x128xbf16>
    %cst_7 = arith.constant dense<0.000000e+00> : vector<4x256xf32>
    %27 = tpu.matmul %26, %25, %cst_7 {dimension_numbers = #tpu.dot_dimension_numbers<[1], [0], [0], [1], [0, 0, 1, 1], [], []>} : vector<4x128xbf16>, vector<128x256xbf16>, vector<4x256xf32> -> vector<4x256xf32>
    %c8_8 = arith.constant 8 : index
    %c0_9 = arith.constant 0 : index
    %28 = vector.load %arg2[%c8_8, %c0_9] : memref<12x1xf32, #tpu.memory_space<vmem>>, vector<4x1xf32>
    %29 = vector.broadcast %28 : vector<4x1xf32> to vector<4x256xf32>
    %30 = arith.addf %27, %29 : vector<4x256xf32>
    %cst_10 = arith.constant 0.000000e+00 : f32
    %31 = vector.broadcast %cst_10 : f32 to vector<4x256xf32>
    %32 = arith.maximumf %30, %31 : vector<4x256xf32>
    %33 = vector.extract_strided_slice %32 {offsets = [0, 0], sizes = [1, 256], strides = [1, 1]} : vector<4x256xf32> to vector<1x256xf32>
    %34 = vector.extract_strided_slice %32 {offsets = [1, 0], sizes = [1, 256], strides = [1, 1]} : vector<4x256xf32> to vector<1x256xf32>
    %35 = vector.extract_strided_slice %32 {offsets = [2, 0], sizes = [1, 256], strides = [1, 1]} : vector<4x256xf32> to vector<1x256xf32>
    %36 = vector.extract_strided_slice %32 {offsets = [3, 0], sizes = [1, 256], strides = [1, 1]} : vector<4x256xf32> to vector<1x256xf32>
    %37 = tpu.concatenate %33, %34, %35, %36 in 1 : vector<1x256xf32>, vector<1x256xf32>, vector<1x256xf32>, vector<1x256xf32> -> vector<1x1024xf32>
    %38 = arith.truncf %37 : vector<1x1024xf32> to vector<1x1024xbf16>
    tpu.wait_dma2 semaphore(%arg8 : memref<!tpu.dma_semaphore, #tpu.memory_space<semaphore_mem>>) src(%arg5 : memref<1024x128xbf16, #tpu.memory_space<any>>) dst(%arg7 : memref<1024x128xbf16, #tpu.memory_space<vmem>>)
    %c0_11 = arith.constant 0 : index
    %c0_12 = arith.constant 0 : index
    %39 = vector.load %arg7[%c0_11, %c0_12] : memref<1024x128xbf16, #tpu.memory_space<vmem>>, vector<1024x128xbf16>
    %cst_13 = arith.constant dense<0.000000e+00> : vector<1x128xf32>
    %40 = tpu.matmul %38, %39, %cst_13 {dimension_numbers = #tpu.dot_dimension_numbers<[1], [0], [0], [1], [0, 0, 1, 1], [], []>} : vector<1x1024xbf16>, vector<1024x128xbf16>, vector<1x128xf32> -> vector<1x128xf32>
    %c0_14 = arith.constant 0 : index
    %c0_15 = arith.constant 0 : index
    %41 = vector.load %arg3[%c0_14, %c0_15] : memref<2x128xf32, #tpu.memory_space<vmem>>, vector<1x128xf32>
    %42 = arith.addf %40, %41 : vector<1x128xf32>
    %cst_16 = arith.constant 0.000000e+00 : f32
    %43 = vector.broadcast %cst_16 : f32 to vector<1x128xf32>
    %44 = arith.maximumf %42, %43 : vector<1x128xf32>
    %45 = arith.truncf %44 : vector<1x128xf32> to vector<1x128xbf16>
    %c0_17 = arith.constant 0 : index
    %c0_18 = arith.constant 0 : index
    %46 = vector.load %arg4[%c0_17, %c0_18] : memref<128x128xbf16, #tpu.memory_space<vmem>>, vector<128x128xbf16>
    %cst_19 = arith.constant dense<0.000000e+00> : vector<1x128xf32>
    %47 = tpu.matmul %45, %46, %cst_19 {dimension_numbers = #tpu.dot_dimension_numbers<[1], [0], [0], [1], [0, 0, 1, 1], [], []>} : vector<1x128xbf16>, vector<128x128xbf16>, vector<1x128xf32> -> vector<1x128xf32>
    %c1 = arith.constant 1 : index
    %c0_20 = arith.constant 0 : index
    %48 = vector.load %arg3[%c1, %c0_20] : memref<2x128xf32, #tpu.memory_space<vmem>>, vector<1x128xf32>
    %49 = arith.addf %47, %48 : vector<1x128xf32>
    %cst_21 = arith.constant dense<0xFF800000> : vector<1xf32>
    %50 = vector.multi_reduction <maximumf>, %49, %cst_21 [1] : vector<1x128xf32> to vector<1xf32>
    %51 = vector.shape_cast %50 : vector<1xf32> to vector<1x1xf32>
    %52 = vector.broadcast %51 : vector<1x1xf32> to vector<1x128xf32>
    %53 = arith.subf %49, %52 : vector<1x128xf32>
    %54 = math.exp %53 : vector<1x128xf32>
    %cst_22 = arith.constant dense<0.000000e+00> : vector<1xf32>
    %55 = vector.multi_reduction <add>, %54, %cst_22 [1] : vector<1x128xf32> to vector<1xf32>
    %56 = vector.shape_cast %55 : vector<1xf32> to vector<1x1xf32>
    %57 = tpu.reciprocal %56 {approx = true} : vector<1x1xf32> -> vector<1x1xf32>
    %58 = vector.broadcast %57 : vector<1x1xf32> to vector<1x128xf32>
    %59 = arith.mulf %54, %58 : vector<1x128xf32>
    %c0_23 = arith.constant 0 : index
    %c0_24 = arith.constant 0 : index
    %60 = vector.load %arg6[%c0_23, %c0_24] : memref<1x128xf32, #tpu.memory_space<vmem>>, vector<1x128xf32>
    tpu.vector_store %arg6[%c0_23, %c0_24], %59 {strides = array<i32>} : memref<1x128xf32, #tpu.memory_space<vmem>>, vector<1x128xf32>,
    return
  }
}

</mosaic_0001>

<llo_original>
// kernel: prim_big_forward.1
$region0: #{prim_big_forward.1}
  #allocation0 [shape = 'u32[]', space=smem, size = 0x4, offset = 0x4, fixed_abs, tag = 'smem constant byte address 0x4 - core index']
  #allocation1 [shape = 'u32[144,128]{1,0:T(1,128)}', space=vmem, size = 0x12000, scoped, tag = 'internal scratch']
  #allocation2 [shape = 'bf16[1024,128]{1,0:T(16,128)(2,1)}', space=vmem, size = 0x40000, scoped, tag = 'scratch operand']
  #allocation3 [shape = 's32[1]{0}', space=sflag, size = 0x4, scoped, tag = 'scratch operand']
  #allocation4 [shape = 's32[]', space=sflag, size = 0x4, offset = 0, fixed_abs, tag = 'sflag constant byte address 0x0 - dummy sync flag']
  %s0 = inlined_call_operand.vmem [shape: bf16[64,384], index: 0, kind: input, shape index: {}]
  %s1 = inlined_call_operand.vmem [shape: bf16[12,128], index: 1, kind: input, shape index: {}]
  %s2 = inlined_call_operand.vmem [shape: f32[12,1], index: 2, kind: input, shape index: {}]
  %s3 = inlined_call_operand.vmem [shape: f32[2,128], index: 3, kind: input, shape index: {}]
  %s4 = inlined_call_operand.vmem [shape: bf16[128,128], index: 4, kind: input, shape index: {}]
  %s5 = inlined_call_operand.vmem [shape: bf16[1024,128], index: 5, kind: input, shape index: {}]
  %s6 = inlined_call_operand.vmem [shape: f32[1,128], index: 6, kind: output, shape index: {}]
  %s7 = sld [smem:[#allocation0]]
  $region64: #{prim_big_forward.1} parent=0
    _
  %s9 = ssub.s32 1, %s7
  %s10 = scalar_select 0, %s9, %s7
  // Predicated region
  $region2: #{prim_big_forward.1} parent=0 // pred_check
    _
  $region3: #{prim_big_forward.1} parent=0 // pred_check_branch
    %12 = sbr.rel (0) target = $region5
  $region4: #{prim_big_forward.1} parent=0 // pred_region
    _
  $region5: #{prim_big_forward.1} parent=0 // pred_fallthru
    _
  // Predicated region
  $region6: #{prim_big_forward.1} parent=0 // pred_check
    _
  $region7: #{prim_big_forward.1} parent=0 // pred_check_branch
    %14 = sbr.rel (0) target = $region9
  $region8: #{prim_big_forward.1} parent=0 // pred_region
    _
  $region9: #{prim_big_forward.1} parent=0 // pred_fallthru
    _
  // Predicated region
  $region10: #{prim_big_forward.1} parent=0 // pred_check
    _
  $region11: #{prim_big_forward.1} parent=0 // pred_check_branch
    %16 = sbr.rel (0) target = $region13
  $region12: #{prim_big_forward.1} parent=0 // pred_region
    _
  $region13: #{prim_big_forward.1} parent=0 // pred_fallthru
    _
  // Predicated region
  $region14: #{prim_big_forward.1} parent=0 // pred_check
    _
  $region15: #{prim_big_forward.1} parent=0 // pred_check_branch
    %18 = sbr.rel (0) target = $region17
  $region16: #{prim_big_forward.1} parent=0 // pred_region
    _
  $region17: #{prim_big_forward.1} parent=0 // pred_fallthru
    _
  // Predicated region
  $region18: #{prim_big_forward.1} parent=0 // pred_check
    _
  $region19: #{prim_big_forward.1} parent=0 // pred_check_branch
    %20 = sbr.rel (0) target = $region21
  $region20: #{prim_big_forward.1} parent=0 // pred_region
    _
  $region21: #{prim_big_forward.1} parent=0 // pred_fallthru
    _
  %p23 = scmp.lt.u32.totalorder 512, 8
  %p24 = pneg %p23
  // Predicated region
  $region22: #{prim_big_forward.1} parent=0 // pred_check
    _
  $region23: #{prim_big_forward.1} parent=0 // pred_check_branch
    %26 = sbr.rel (%p23) target = $region25
  $region24: #{prim_big_forward.1} parent=0 // pred_region
    %s41 = sand.u32 512, 7
    %p42 = scmp.eq.s32.totalorder %s41, 0
    // Predicated region
    $region37: #{prim_big_forward.1} parent=24 // pred_check
      %p43 = pneg %p42
    $region38: #{prim_big_forward.1} parent=24 // pred_check_branch
      %45 = sbr.rel (%p43) target = $region40
    $region39: #{prim_big_forward.1} parent=24 // pred_region
      loop: start=0, step=1, limit=1
      $region41: #{prim_big_forward.1} parent=39 // loop_pre_header
        _
      $region42: #{prim_big_forward.1} parent=39 // loop_header
        %s47 = sphi 0, %s51
        %p48 = scmp.ge.s32.totalorder %s47, 1
        %s52 = sphi %s5, %s5
        %s53 = sphi [#allocation2], [#allocation2]
      $region43: #{prim_big_forward.1} parent=39 // loop_header_branch
        %50 = sbr.rel (%p48) target = $region47
      $region44: #{prim_big_forward.1} parent=39 // loop_body
        %v54 = vld [vmem:[%s52] sm:$0xff]
        %55 = vst [vmem:[%s53] sm:$0xff] %v54
        %v56 = vld [vmem:[%s52 + $0x8] sm:$0xff]
        %57 = vst [vmem:[%s53 + $0x8] sm:$0xff] %v56
        %v58 = vld [vmem:[%s52 + $0x10] sm:$0xff]
        %59 = vst [vmem:[%s53 + $0x10] sm:$0xff] %v58
        %v60 = vld [vmem:[%s52 + $0x18] sm:$0xff]
        %61 = vst [vmem:[%s53 + $0x18] sm:$0xff] %v60
        %v62 = vld [vmem:[%s52 + $0x20] sm:$0xff]
        %63 = vst [vmem:[%s53 + $0x20] sm:$0xff] %v62
        %v64 = vld [vmem:[%s52 + $0x28] sm:$0xff]
        %65 = vst [vmem:[%s53 + $0x28] sm:$0xff] %v64
        %v66 = vld [vmem:[%s52 + $0x30] sm:$0xff]
        %67 = vst [vmem:[%s53 + $0x30] sm:$0xff] %v66
        %v68 = vld [vmem:[%s52 + $0x38] sm:$0xff]
        %69 = vst [vmem:[%s53 + $0x38] sm:$0xff] %v68
        %v70 = vld [vmem:[%s52 + $0x40] sm:$0xff]
        %71 = vst [vmem:[%s53 + $0x40] sm:$0xff] %v70
        %v72 = vld [vmem:[%s52 + $0x48] sm:$0xff]
        %73 = vst [vmem:[%s53 + $0x48] sm:$0xff] %v72
        %v74 = vld [vmem:[%s52 + $0x50] sm:$0xff]
        %75 = vst [vmem:[%s53 + $0x50] sm:$0xff] %v74
        %v76 = vld [vmem:[%s52 + $0x58] sm:$0xff]
        %77 = vst [vmem:[%s53 + $0x58] sm:$0xff] %v76
        %v78 = vld [vmem:[%s52 + $0x60] sm:$0xff]
        %79 = vst [vmem:[%s53 + $0x60] sm:$0xff] %v78
        %v80 = vld [vmem:[%s52 + $0x68] sm:$0xff]
        %81 = vst [vmem:[%s53 + $0x68] sm:$0xff] %v80
        %v82 = vld [vmem:[%s52 + $0x70] sm:$0xff]
        %83 = vst [vmem:[%s53 + $0x70] sm:$0xff] %v82
        %v84 = vld [vmem:[%s52 + $0x78] sm:$0xff]
        %85 = vst [vmem:[%s53 + $0x78] sm:$0xff] %v84
        %v86 = vld [vmem:[%s52 + $0x80] sm:$0xff]
        %87 = vst [vmem:[%s53 + $0x80] sm:$0xff] %v86
        %v88 = vld [vmem:[%s52 + $0x88] sm:$0xff]
        %89 = vst [vmem:[%s53 + $0x88] sm:$0xff] %v88
        %v90 = vld [vmem:[%s52 + $0x90] sm:$0xff]
        %91 = vst [vmem:[%s53 + $0x90] sm:$0xff] %v90
        %v92 = vld [vmem:[%s52 + $0x98] sm:$0xff]
        %93 = vst [vmem:[%s53 + $0x98] sm:$0xff] %v92
        %v94 = vld [vmem:[%s52 + $0xa0] sm:$0xff]
        %95 = vst [vmem:[%s53 + $0xa0] sm:$0xff] %v94
        %v96 = vld [vmem:[%s52 + $0xa8] sm:$0xff]
        %97 = vst [vmem:[%s53 + $0xa8] sm:$0xff] %v96
        %v98 = vld [vmem:[%s52 + $0xb0] sm:$0xff]
        %99 = vst [vmem:[%s53 + $0xb0] sm:$0xff] %v98
        %v100 = vld [vmem:[%s52 + $0xb8] sm:$0xff]
        %101 = vst [vmem:[%s53 + $0xb8] sm:$0xff] %v100
        %v102 = vld [vmem:[%s52 + $0xc0] sm:$0xff]
        %103 = vst [vmem:[%s53 + $0xc0] sm:$0xff] %v102
        %v104 = vld [vmem:[%s52 + $0xc8] sm:$0xff]
        %105 = vst [vmem:[%s53 + $0xc8] sm:$0xff] %v104
        %v106 = vld [vmem:[%s52 + $0xd0] sm:$0xff]
        %107 = vst [vmem:[%s53 + $0xd0] sm:$0xff] %v106
        %v108 = vld [vmem:[%s52 + $0xd8] sm:$0xff]
        %109 = vst [vmem:[%s53 + $0xd8] sm:$0xff] %v108
        %v110 = vld [vmem:[%s52 + $0xe0] sm:$0xff]
        %111 = vst [vmem:[%s53 + $0xe0] sm:$0xff] %v110
        %v112 = vld [vmem:[%s52 + $0xe8] sm:$0xff]
        %113 = vst [vmem:[%s53 + $0xe8] sm:$0xff] %v112
        %v114 = vld [vmem:[%s52 + $0xf0] sm:$0xff]
        %115 = vst [vmem:[%s53 + $0xf0] sm:$0xff] %v114
        %v116 = vld [vmem:[%s52 + $0xf8] sm:$0xff]
        %117 = vst [vmem:[%s53 + $0xf8] sm:$0xff] %v116
        %v118 = vld [vmem:[%s52 + $0x100] sm:$0xff]
        %119 = vst [vmem:[%s53 + $0x100] sm:$0xff] %v118
        %v120 = vld [vmem:[%s52 + $0x108] sm:$0xff]
        %121 = vst [vmem:[%s53 + $0x108] sm:$0xff] %v120
        %v122 = vld [vmem:[%s52 + $0x110] sm:$0xff]
        %123 = vst [vmem:[%s53 + $0x110] sm:$0xff] %v122
        %v124 = vld [vmem:[%s52 + $0x118] sm:$0xff]
        %125 = vst [vmem:[%s53 + $0x118] sm:$0xff] %v124
        %v126 = vld [vmem:[%s52 + $0x120] sm:$0xff]
        %127 = vst [vmem:[%s53 + $0x120] sm:$0xff] %v126
        %v128 = vld [vmem:[%s52 + $0x128] sm:$0xff]
        %129 = vst [vmem:[%s53 + $0x128] sm:$0xff] %v128
        %v130 = vld [vmem:[%s52 + $0x130] sm:$0xff]
        %131 = vst [vmem:[%s53 + $0x130] sm:$0xff] %v130
        %v132 = vld [vmem:[%s52 + $0x138] sm:$0xff]
        %133 = vst [vmem:[%s53 + $0x138] sm:$0xff] %v132
        %v134 = vld [vmem:[%s52 + $0x140] sm:$0xff]
        %135 = vst [vmem:[%s53 + $0x140] sm:$0xff] %v134
        %v136 = vld [vmem:[%s52 + $0x148] sm:$0xff]
        %137 = vst [vmem:[%s53 + $0x148] sm:$0xff] %v136
        %v138 = vld [vmem:[%s52 + $0x150] sm:$0xff]
        %139 = vst [vmem:[%s53 + $0x150] sm:$0xff] %v138
        %v140 = vld [vmem:[%s52 + $0x158] sm:$0xff]
        %141 = vst [vmem:[%s53 + $0x158] sm:$0xff] %v140
        %v142 = vld [vmem:[%s52 + $0x160] sm:$0xff]
        %143 = vst [vmem:[%s53 + $0x160] sm:$0xff] %v142
        %v144 = vld [vmem:[%s52 + $0x168] sm:$0xff]
        %145 = vst [vmem:[%s53 + $0x168] sm:$0xff] %v144
        %v146 = vld [vmem:[%s52 + $0x170] sm:$0xff]
        %147 = vst [vmem:[%s53 + $0x170] sm:$0xff] %v146
        %v148 = vld [vmem:[%s52 + $0x178] sm:$0xff]
        %149 = vst [vmem:[%s53 + $0x178] sm:$0xff] %v148
        %v150 = vld [vmem:[%s52 + $0x180] sm:$0xff]
        %151 = vst [vmem:[%s53 + $0x180] sm:$0xff] %v150
        %v152 = vld [vmem:[%s52 + $0x188] sm:$0xff]
        %153 = vst [vmem:[%s53 + $0x188] sm:$0xff] %v152
        %v154 = vld [vmem:[%s52 + $0x190] sm:$0xff]
        %155 = vst [vmem:[%s53 + $0x190] sm:$0xff] %v154
        %v156 = vld [vmem:[%s52 + $0x198] sm:$0xff]
        %157 = vst [vmem:[%s53 + $0x198] sm:$0xff] %v156
        %v158 = vld [vmem:[%s52 + $0x1a0] sm:$0xff]
        %159 = vst [vmem:[%s53 + $0x1a0] sm:$0xff] %v158
        %v160 = vld [vmem:[%s52 + $0x1a8] sm:$0xff]
        %161 = vst [vmem:[%s53 + $0x1a8] sm:$0xff] %v160
        %v162 = vld [vmem:[%s52 + $0x1b0] sm:$0xff]
        %163 = vst [vmem:[%s53 + $0x1b0] sm:$0xff] %v162
        %v164 = vld [vmem:[%s52 + $0x1b8] sm:$0xff]
        %165 = vst [vmem:[%s53 + $0x1b8] sm:$0xff] %v164
        %v166 = vld [vmem:[%s52 + $0x1c0] sm:$0xff]
        %167 = vst [vmem:[%s53 + $0x1c0] sm:$0xff] %v166
        %v168 = vld [vmem:[%s52 + $0x1c8] sm:$0xff]
        %169 = vst [vmem:[%s53 + $0x1c8] sm:$0xff] %v168
        %v170 = vld [vmem:[%s52 + $0x1d0] sm:$0xff]
        %171 = vst [vmem:[%s53 + $0x1d0] sm:$0xff] %v170
        %v172 = vld [vmem:[%s52 + $0x1d8] sm:$0xff]
        %173 = vst [vmem:[%s53 + $0x1d8] sm:$0xff] %v172
        %v174 = vld [vmem:[%s52 + $0x1e0] sm:$0xff]
        %175 = vst [vmem:[%s53 + $0x1e0] sm:$0xff] %v174
        %v176 = vld [vmem:[%s52 + $0x1e8] sm:$0xff]
        %177 = vst [vmem:[%s53 + $0x1e8] sm:$0xff] %v176
        %v178 = vld [vmem:[%s52 + $0x1f0] sm:$0xff]
        %179 = vst [vmem:[%s53 + $0x1f0] sm:$0xff] %v178
        %v180 = vld [vmem:[%s52 + $0x1f8] sm:$0xff]
        %181 = vst [vmem:[%s53 + $0x1f8] sm:$0xff] %v180
      $region45: #{prim_big_forward.1} parent=39 // loop_footer
        %s51 = sadd.s32 1, %s47
      $region46: #{prim_big_forward.1} parent=39 // loop_footer_branch
        %46 = sbr.rel target = $region42
      $region47: #{prim_big_forward.1} parent=39 // loop_exit
        _
    $region40: #{prim_big_forward.1} parent=24 // pred_fallthru
      _
    %p182 = pneg %p42
    // Predicated region
    $region48: #{prim_big_forward.1} parent=24 // pred_check
      _
    $region49: #{prim_big_forward.1} parent=24 // pred_check_branch
      %184 = sbr.rel (%p42) target = $region51
    $region50: #{prim_big_forward.1} parent=24 // pred_region
      %s185 = sand.u32 512, 7
    $region51: #{prim_big_forward.1} parent=24 // pred_fallthru
      _
  $region25: #{prim_big_forward.1} parent=0 // pred_fallthru
    _
  // Predicated region
  $region26: #{prim_big_forward.1} parent=0 // pred_check
    %p27 = pneg %p23
  $region27: #{prim_big_forward.1} parent=0 // pred_check_branch
    %29 = sbr.rel (%p27) target = $region29
  $region28: #{prim_big_forward.1} parent=0 // pred_region
    %s30 = sshllo.u32 0, 512
    loop: start=0, step=1, limit=1
    $region30: #{prim_big_forward.1} parent=28 // loop_pre_header
      _
    $region31: #{prim_big_forward.1} parent=28 // loop_header
      %s32 = sphi 0, %s36
      %p33 = scmp.ge.s32.totalorder %s32, 1
      %s37 = sphi %s5, %s5
      %s38 = sphi [#allocation2], [#allocation2]
    $region32: #{prim_big_forward.1} parent=28 // loop_header_branch
      %35 = sbr.rel (%p33) target = $region36
    $region33: #{prim_big_forward.1} parent=28 // loop_body
      %v39 = vld [vmem:[%s37] sm:%s30]
      %40 = vst [vmem:[%s38] sm:%s30] %v39
    $region34: #{prim_big_forward.1} parent=28 // loop_footer
      %s36 = sadd.s32 1, %s32
    $region35: #{prim_big_forward.1} parent=28 // loop_footer_branch
      %31 = sbr.rel target = $region31
    $region36: #{prim_big_forward.1} parent=28 // loop_exit
      _
  $region29: #{prim_big_forward.1} parent=0 // pred_fallthru
    _
  // Predicated region
  $region52: #{prim_big_forward.1} parent=0 // pred_check
    _
  $region53: #{prim_big_forward.1} parent=0 // pred_check_branch
    %188 = sbr.rel (0) target = $region55
  $region54: #{prim_big_forward.1} parent=0 // pred_region
    %189 = vsyncadd [#allocation3], 8192
  $region55: #{prim_big_forward.1} parent=0 // pred_fallthru
    _
  %v190 = vld [vmem:[%s1] sm:$0xf]
  %v191 = vld [vmem:[%s0] sm:$0xff]
  %v192 = vld [vmem:[%s0 + $0x8] sm:$0xf]
  %v193 = vld [vmem:[%s0 + $0xc] sm:$0xff]
  %v194 = vld [vmem:[%s0 + $0x14] sm:$0xf]
  %v195 = vld [vmem:[%s0 + $0x18] sm:$0xff]
  %v196 = vld [vmem:[%s0 + $0x20] sm:$0xf]
  %v197 = vld [vmem:[%s0 + $0x24] sm:$0xff]
  %v198 = vld [vmem:[%s0 + $0x2c] sm:$0xf]
  %v199 = vld [vmem:[%s0 + $0x30] sm:$0xff]
  %v200 = vld [vmem:[%s0 + $0x38] sm:$0xf]
  %v201 = vld [vmem:[%s0 + $0x3c] sm:$0xff]
  %v202 = vld [vmem:[%s0 + $0x44] sm:$0xf]
  %v203 = vld [vmem:[%s0 + $0x48] sm:$0xff]
  %v204 = vld [vmem:[%s0 + $0x50] sm:$0xf]
  %v205 = vld [vmem:[%s0 + $0x54] sm:$0xff]
  %v206 = vld [vmem:[%s0 + $0x5c] sm:$0xf]
  %v207 = vld [vmem:[%s2] sm:$0xff]
  %209 = vset.pattern.permute.xlu0 0
  %210 = vperm.xlu0 %209, %v207
  %v211 = vpop.permute.xlu0 %210
  %v229 = vunpack.c.l.b16 %v191
  %v230 = vunpack.c.h.b16 %v191
  %v231 = vunpack.c.l.b16 %v192
  %v232 = vunpack.c.l.b16 %v193
  %v233 = vunpack.c.h.b16 %v193
  %v234 = vunpack.c.l.b16 %v194
  %v235 = vunpack.c.l.b16 %v195
  %v236 = vunpack.c.h.b16 %v195
  %v237 = vunpack.c.l.b16 %v196
  %v238 = vunpack.c.l.b16 %v197
  %v239 = vunpack.c.h.b16 %v197
  %v240 = vunpack.c.l.b16 %v198
  %v241 = vunpack.c.l.b16 %v199
  %v242 = vunpack.c.h.b16 %v199
  %v243 = vunpack.c.l.b16 %v200
  %v244 = vunpack.c.l.b16 %v201
  %v245 = vunpack.c.h.b16 %v201
  %v246 = vunpack.c.l.b16 %v202
  %v247 = vunpack.c.l.b16 %v203
  %v248 = vunpack.c.h.b16 %v203
  %v249 = vunpack.c.l.b16 %v204
  %v250 = vunpack.c.l.b16 %v205
  %v251 = vunpack.c.h.b16 %v205
  %v252 = vunpack.c.l.b16 %v206
  %v253 = vpack.c.b16 %v232, %v229
  %v254 = vpack.c.b16 %v233, %v230
  %v255 = vpack.c.b16 %v234, %v231
  %v256 = vpack.c.b16 %v238, %v235
  %v257 = vpack.c.b16 %v239, %v236
  %v258 = vpack.c.b16 %v240, %v237
  %v259 = vpack.c.b16 %v244, %v241
  %v260 = vpack.c.b16 %v245, %v242
  %v261 = vpack.c.b16 %v246, %v243
  %v262 = vpack.c.b16 %v250, %v247
  %v263 = vpack.c.b16 %v251, %v248
  %v264 = vpack.c.b16 %v252, %v249
  %vm277 = vcmask 523264
  %v279 = vsel %vm277, %v190, 0
  %281 = vmatprep.subr.bf16.mxu0 %v254
  %282 = vmatpush1.bf16.msra.mxu0 %v253
  %283 = vmatprep.subr.bf16.mxu0 %v257
  %284 = vmatpush1.bf16.msra.mxu0 %v256
  %285 = vmatprep.subr.bf16.mxu0 %v260
  %286 = vmatpush1.bf16.msra.mxu0 %v259
  %287 = vmatprep.subr.bf16.mxu0 %v263
  %288 = vmatpush1.bf16.msra.mxu0 %v262
  %289 = vmatprep.subr.bf16.mxu0 0
  %290 = vmatpush1.bf16.msra.mxu0 0
  %291 = vmatprep.subr.bf16.mxu0 0
  %292 = vmatpush1.bf16.msra.mxu0 0
  %293 = vmatprep.subr.bf16.mxu0 0
  %294 = vmatpush1.bf16.msra.mxu0 0
  %295 = vmatprep.subr.bf16.mxu0 0
  %296 = vmatpush1.bf16.msra.mxu0 0
  %297 = vmatprep.subr.bf16.mxu0 0
  %298 = vmatpush1.bf16.msra.mxu0 0
  %299 = vmatprep.subr.bf16.mxu0 0
  %300 = vmatpush1.bf16.msra.mxu0 0
  %301 = vmatprep.subr.bf16.mxu0 0
  %302 = vmatpush1.bf16.msra.mxu0 0
  %303 = vmatprep.subr.bf16.mxu0 0
  %304 = vmatpush1.bf16.msra.mxu0 0
  %305 = vmatprep.subr.bf16.mxu0 0
  %306 = vmatpush1.bf16.msra.mxu0 0
  %307 = vmatprep.subr.bf16.mxu0 0
  %308 = vmatpush1.bf16.msra.mxu0 0
  %309 = vmatprep.subr.bf16.mxu0 0
  %310 = vmatpush1.bf16.msra.mxu0 0
  %311 = vmatprep.subr.bf16.mxu0 0
  %312 = vmatpush1.bf16.msra.mxu0 0
  %313 = vmatprep.mubr.bf16.mxu0 0
  %314 = vmatmul.mubr.bf16.gmra.mrb[0].mxu0 %v279
  %v315 = vpop.f32.mrb[0].mxu0
  %v316 = vadd.f32 %v211, %v315
  %v317 = vpop.f32.mrb[0].mxu0
  %v318 = vadd.f32 %v211, %v317
  %v319 = vpop.f32.mrb[0].mxu0
  %v320 = vpop.f32.mrb[0].mxu0
  %321 = vdwg.mxu0
  %322 = vmatprep.subr.bf16.mxu0 0
  %323 = vmatpush1.bf16.msra.mxu0 %v255
  %324 = vmatprep.subr.bf16.mxu0 0
  %325 = vmatpush1.bf16.msra.mxu0 %v258
  %326 = vmatprep.subr.bf16.mxu0 0
  %327 = vmatpush1.bf16.msra.mxu0 %v261
  %328 = vmatprep.subr.bf16.mxu0 0
  %329 = vmatpush1.bf16.msra.mxu0 %v264
  %330 = vmatprep.subr.bf16.mxu0 0
  %331 = vmatpush1.bf16.msra.mxu0 0
  %332 = vmatprep.subr.bf16.mxu0 0
  %333 = vmatpush1.bf16.msra.mxu0 0
  %334 = vmatprep.subr.bf16.mxu0 0
  %335 = vmatpush1.bf16.msra.mxu0 0
  %336 = vmatprep.subr.bf16.mxu0 0
  %337 = vmatpush1.bf16.msra.mxu0 0
  %338 = vmatprep.subr.bf16.mxu0 0
  %339 = vmatpush1.bf16.msra.mxu0 0
  %340 = vmatprep.subr.bf16.mxu0 0
  %341 = vmatpush1.bf16.msra.mxu0 0
  %342 = vmatprep.subr.bf16.mxu0 0
  %343 = vmatpush1.bf16.msra.mxu0 0
  %344 = vmatprep.subr.bf16.mxu0 0
  %345 = vmatpush1.bf16.msra.mxu0 0
  %346 = vmatprep.subr.bf16.mxu0 0
  %347 = vmatpush1.bf16.msra.mxu0 0
  %348 = vmatprep.subr.bf16.mxu0 0
  %349 = vmatpush1.bf16.msra.mxu0 0
  %350 = vmatprep.subr.bf16.mxu0 0
  %351 = vmatpush1.bf16.msra.mxu0 0
  %352 = vmatprep.subr.bf16.mxu0 0
  %353 = vmatpush1.bf16.msra.mxu0 0
  %354 = vmatprep.mubr.bf16.mxu0 0
  %355 = vmatmul.mubr.bf16.gmra.mrb[0].mxu0 %v279
  %v356 = vpop.f32.mrb[0].mxu0
  %v357 = vadd.f32 %v211, %v356
  %v358 = vpop.f32.mrb[0].mxu0
  %v359 = vpop.f32.mrb[0].mxu0
  %v360 = vpop.f32.mrb[0].mxu0
  %361 = vdwg.mxu0
  %v362 = vmax.f32 %v316, 0.0
  %v363 = vmax.f32 %v318, 0.0
  %v364 = vmax.f32 %v357, 0.0
  %368 = vrot.lane.b32.xlu0 %v362, 127
  %v369 = vpop.permute.xlu0 %368
  %370 = vrot.lane.b32.xlu0 %v363, 127
  %v371 = vpop.permute.xlu0 %370
  %372 = vrot.lane.b32.xlu0 %v364, 127
  %v373 = vpop.permute.xlu0 %372
  %vm374 = vcmask 1039360
  %v375 = vsel %vm374, %v369, %v371
  %v376 = vsel %vm374, %v371, %v373
  %379 = vrot.lane.b32.xlu0 %v362, 126
  %v380 = vpop.permute.xlu0 %379
  %381 = vrot.lane.b32.xlu0 %v363, 126
  %v382 = vpop.permute.xlu0 %381
  %383 = vrot.lane.b32.xlu0 %v364, 126
  %v384 = vpop.permute.xlu0 %383
  %vm385 = vcmask 1031168
  %v386 = vsel %vm385, %v380, %v382
  %v387 = vsel %vm385, %v382, %v384
  %390 = vrot.lane.b32.xlu0 %v362, 125
  %v391 = vpop.permute.xlu0 %390
  %392 = vrot.lane.b32.xlu0 %v363, 125
  %v393 = vpop.permute.xlu0 %392
  %394 = vrot.lane.b32.xlu0 %v364, 125
  %v395 = vpop.permute.xlu0 %394
  %vm396 = vcmask 1022976
  %v397 = vsel %vm396, %v391, %v393
  %v398 = vsel %vm396, %v393, %v395
  %401 = vrot.lane.b32.xlu0 %v362, 111
  %v402 = vpop.permute.xlu0 %401
  %403 = vrot.lane.b32.xlu0 %v363, 111
  %v404 = vpop.permute.xlu0 %403
  %405 = vrot.lane.b32.xlu0 %v364, 111
  %v406 = vpop.permute.xlu0 %405
  %vm407 = vcmask 908288
  %v408 = vsel %vm407, %v402, %v404
  %v409 = vsel %vm407, %v404, %v406
  %412 = vrot.lane.b32.xlu0 %v362, 110
  %v413 = vpop.permute.xlu0 %412
  %414 = vrot.lane.b32.xlu0 %v363, 110
  %v415 = vpop.permute.xlu0 %414
  %416 = vrot.lane.b32.xlu0 %v364, 110
  %v417 = vpop.permute.xlu0 %416
  %vm418 = vcmask 900096
  %v419 = vsel %vm418, %v413, %v415
  %v420 = vsel %vm418, %v415, %v417
  %423 = vrot.lane.b32.xlu0 %v362, 109
  %v424 = vpop.permute.xlu0 %423
  %425 = vrot.lane.b32.xlu0 %v363, 109
  %v426 = vpop.permute.xlu0 %425
  %427 = vrot.lane.b32.xlu0 %v364, 109
  %v428 = vpop.permute.xlu0 %427
  %vm429 = vcmask 891904
  %v430 = vsel %vm429, %v424, %v426
  %v431 = vsel %vm429, %v426, %v428
  %434 = vrot.lane.b32.xlu0 %v362, 108
  %v435 = vpop.permute.xlu0 %434
  %436 = vrot.lane.b32.xlu0 %v363, 108
  %v437 = vpop.permute.xlu0 %436
  %438 = vrot.lane.b32.xlu0 %v364, 108
  %v439 = vpop.permute.xlu0 %438
  %vm440 = vcmask 883712
  %v441 = vsel %vm440, %v435, %v437
  %v442 = vsel %vm440, %v437, %v439
  %445 = vrot.lane.b32.xlu0 %v362, 94
  %v446 = vpop.permute.xlu0 %445
  %447 = vrot.lane.b32.xlu0 %v363, 94
  %v448 = vpop.permute.xlu0 %447
  %449 = vrot.lane.b32.xlu0 %v364, 94
  %v450 = vpop.permute.xlu0 %449
  %vm451 = vcmask 769024
  %v452 = vsel %vm451, %v446, %v448
  %v453 = vsel %vm451, %v448, %v450
  %456 = vrot.lane.b32.xlu0 %v362, 93
  %v457 = vpop.permute.xlu0 %456
  %458 = vrot.lane.b32.xlu0 %v363, 93
  %v459 = vpop.permute.xlu0 %458
  %460 = vrot.lane.b32.xlu0 %v364, 93
  %v461 = vpop.permute.xlu0 %460
  %vm462 = vcmask 760832
  %v463 = vsel %vm462, %v457, %v459
  %v464 = vsel %vm462, %v459, %v461
  %467 = vrot.lane.b32.xlu0 %v362, 92
  %v468 = vpop.permute.xlu0 %467
  %469 = vrot.lane.b32.xlu0 %v363, 92
  %v470 = vpop.permute.xlu0 %469
  %471 = vrot.lane.b32.xlu0 %v364, 92
  %v472 = vpop.permute.xlu0 %471
  %vm473 = vcmask 752640
  %v474 = vsel %vm473, %v468, %v470
  %v475 = vsel %vm473, %v470, %v472
  %478 = vrot.lane.b32.xlu0 %v362, 91
  %v479 = vpop.permute.xlu0 %478
  %480 = vrot.lane.b32.xlu0 %v363, 91
  %v481 = vpop.permute.xlu0 %480
  %482 = vrot.lane.b32.xlu0 %v364, 91
  %v483 = vpop.permute.xlu0 %482
  %vm484 = vcmask 744448
  %v485 = vsel %vm484, %v479, %v481
  %v486 = vsel %vm484, %v481, %v483
  %489 = vrot.lane.b32.xlu0 %v362, 77
  %v490 = vpop.permute.xlu0 %489
  %491 = vrot.lane.b32.xlu0 %v363, 77
  %v492 = vpop.permute.xlu0 %491
  %493 = vrot.lane.b32.xlu0 %v364, 77
  %v494 = vpop.permute.xlu0 %493
  %vm495 = vcmask 629760
  %v496 = vsel %vm495, %v490, %v492
  %v497 = vsel %vm495, %v492, %v494
  %500 = vrot.lane.b32.xlu0 %v362, 76
  %v501 = vpop.permute.xlu0 %500
  %502 = vrot.lane.b32.xlu0 %v363, 76
  %v503 = vpop.permute.xlu0 %502
  %504 = vrot.lane.b32.xlu0 %v364, 76
  %v505 = vpop.permute.xlu0 %504
  %vm506 = vcmask 621568
  %v507 = vsel %vm506, %v501, %v503
  %v508 = vsel %vm506, %v503, %v505
  %511 = vrot.lane.b32.xlu0 %v362, 75
  %v512 = vpop.permute.xlu0 %511
  %513 = vrot.lane.b32.xlu0 %v363, 75
  %v514 = vpop.permute.xlu0 %513
  %515 = vrot.lane.b32.xlu0 %v364, 75
  %v516 = vpop.permute.xlu0 %515
  %vm517 = vcmask 613376
  %v518 = vsel %vm517, %v512, %v514
  %v519 = vsel %vm517, %v514, %v516
  %522 = vrot.lane.b32.xlu0 %v362, 74
  %v523 = vpop.permute.xlu0 %522
  %524 = vrot.lane.b32.xlu0 %v363, 74
  %v525 = vpop.permute.xlu0 %524
  %526 = vrot.lane.b32.xlu0 %v364, 74
  %v527 = vpop.permute.xlu0 %526
  %vm528 = vcmask 605184
  %v529 = vsel %vm528, %v523, %v525
  %v530 = vsel %vm528, %v525, %v527
  %v533 = vpack.c.bf16 %v375, %v362
  %v534 = vpack.c.bf16 %v376, %v363
  %v535 = vpack.c.bf16 %v397, %v386
  %v536 = vpack.c.bf16 %v398, %v387
  %v537 = vpack.c.bf16 %v419, %v408
  %v538 = vpack.c.bf16 %v420, %v409
  %v539 = vpack.c.bf16 %v441, %v430
  %v540 = vpack.c.bf16 %v442, %v431
  %v541 = vpack.c.bf16 %v463, %v452
  %v542 = vpack.c.bf16 %v464, %v453
  %v543 = vpack.c.bf16 %v485, %v474
  %v544 = vpack.c.bf16 %v486, %v475
  %v545 = vpack.c.bf16 %v507, %v496
  %v546 = vpack.c.bf16 %v508, %v497
  %v547 = vpack.c.bf16 %v529, %v518
  %v548 = vpack.c.bf16 %v530, %v519
  %v549 = vld [vmem:[%s1 + $0x4] sm:$0x3]
  %v550 = vld [vmem:[%s2 + $0x8] sm:$0xf]
  %552 = vset.pattern.permute.xlu0 0
  %553 = vperm.xlu0 %552, %v550
  %v554 = vpop.permute.xlu0 %553
  %556 = vmatprep.subr.bf16.mxu0 %v534
  %557 = vmatpush1.bf16.msra.mxu0 %v533
  %558 = vmatprep.subr.bf16.mxu0 %v536
  %559 = vmatpush1.bf16.msra.mxu0 %v535
  %560 = vmatprep.subr.bf16.mxu0 %v538
  %561 = vmatpush1.bf16.msra.mxu0 %v537
  %562 = vmatprep.subr.bf16.mxu0 %v540
  %563 = vmatpush1.bf16.msra.mxu0 %v539
  %564 = vmatprep.subr.bf16.mxu0 %v542
  %565 = vmatpush1.bf16.msra.mxu0 %v541
  %566 = vmatprep.subr.bf16.mxu0 %v544
  %567 = vmatpush1.bf16.msra.mxu0 %v543
  %568 = vmatprep.subr.bf16.mxu0 %v546
  %569 = vmatpush1.bf16.msra.mxu0 %v545
  %570 = vmatprep.subr.bf16.mxu0 %v548
  %571 = vmatpush1.bf16.msra.mxu0 %v547
  %572 = vmatprep.subr.bf16.mxu0 0
  %573 = vmatpush1.bf16.msra.mxu0 0
  %574 = vmatprep.subr.bf16.mxu0 0
  %575 = vmatpush1.bf16.msra.mxu0 0
  %576 = vmatprep.subr.bf16.mxu0 0
  %577 = vmatpush1.bf16.msra.mxu0 0
  %578 = vmatprep.subr.bf16.mxu0 0
  %579 = vmatpush1.bf16.msra.mxu0 0
  %580 = vmatprep.subr.bf16.mxu0 0
  %581 = vmatpush1.bf16.msra.mxu0 0
  %582 = vmatprep.subr.bf16.mxu0 0
  %583 = vmatpush1.bf16.msra.mxu0 0
  %584 = vmatprep.subr.bf16.mxu0 0
  %585 = vmatpush1.bf16.msra.mxu0 0
  %586 = vmatprep.subr.bf16.mxu0 0
  %587 = vmatpush1.bf16.msra.mxu0 0
  %588 = vmatprep.mubr.bf16.mxu0 0
  %589 = vmatmul.mubr.bf16.gmra.mrb[0].mxu0 %v549
  %v590 = vpop.f32.mrb[0].mxu0
  %v591 = vadd.f32 %v554, %v590
  %v592 = vpop.f32.mrb[0].mxu0
  %v593 = vadd.f32 %v554, %v592
  %v594 = vpop.f32.mrb[0].mxu0
  %v595 = vpop.f32.mrb[0].mxu0
  %596 = vdwg.mxu0
  %v597 = vmax.f32 %v591, 0.0
  %v598 = vmax.f32 %v593, 0.0
  %v601 = vrot.slane %v597, 1
  %v602 = vrot.slane %v598, 1
  %v605 = vrot.slane %v597, 2
  %v606 = vrot.slane %v598, 2
  %v609 = vrot.slane %v597, 3
  %v610 = vrot.slane %v598, 3
  %v613 = vpack.c.bf16 %v597, %v597
  %v614 = vpack.c.bf16 %v598, %v598
  %v615 = vpack.c.bf16 %v601, %v601
  %v616 = vpack.c.bf16 %v602, %v602
  %v617 = vpack.c.bf16 %v605, %v605
  %v618 = vpack.c.bf16 %v606, %v606
  %v619 = vpack.c.bf16 %v609, %v609
  %v620 = vpack.c.bf16 %v610, %v610
  %s621 = smul.u32 4, 128
  %s622 = smul.u32 %s621, 1
  %s623 = sshll.u32 %s622, 4
  %624 = dma.done [#allocation3], %s623
  %v625 = vld [vmem:[#allocation2] sm:$0xff]
  %v626 = vld [vmem:[#allocation2 + $0x8] sm:$0xff]
  %v627 = vld [vmem:[#allocation2 + $0x10] sm:$0xff]
  %v628 = vld [vmem:[#allocation2 + $0x18] sm:$0xff]
  %v629 = vld [vmem:[#allocation2 + $0x20] sm:$0xff]
  %v630 = vld [vmem:[#allocation2 + $0x28] sm:$0xff]
  %v631 = vld [vmem:[#allocation2 + $0x30] sm:$0xff]
  %v632 = vld [vmem:[#allocation2 + $0x38] sm:$0xff]
  %v633 = vld [vmem:[#allocation2 + $0x40] sm:$0xff]
  %v634 = vld [vmem:[#allocation2 + $0x48] sm:$0xff]
  %v635 = vld [vmem:[#allocation2 + $0x50] sm:$0xff]
  %v636 = vld [vmem:[#allocation2 + $0x58] sm:$0xff]
  %v637 = vld [vmem:[#allocation2 + $0x60] sm:$0xff]
  %v638 = vld [vmem:[#allocation2 + $0x68] sm:$0xff]
  %v639 = vld [vmem:[#allocation2 + $0x70] sm:$0xff]
  %v640 = vld [vmem:[#allocation2 + $0x78] sm:$0xff]
  %v641 = vld [vmem:[#allocation2 + $0x80] sm:$0xff]
  %v642 = vld [vmem:[#allocation2 + $0x88] sm:$0xff]
  %v643 = vld [vmem:[#allocation2 + $0x90] sm:$0xff]
  %v644 = vld [vmem:[#allocation2 + $0x98] sm:$0xff]
  %v645 = vld [vmem:[#allocation2 + $0xa0] sm:$0xff]
  %v646 = vld [vmem:[#allocation2 + $0xa8] sm:$0xff]
  %v647 = vld [vmem:[#allocation2 + $0xb0] sm:$0xff]
  %v648 = vld [vmem:[#allocation2 + $0xb8] sm:$0xff]
  %v649 = vld [vmem:[#allocation2 + $0xc0] sm:$0xff]
  %v650 = vld [vmem:[#allocation2 + $0xc8] sm:$0xff]
  %v651 = vld [vmem:[#allocation2 + $0xd0] sm:$0xff]
  %v652 = vld [vmem:[#allocation2 + $0xd8] sm:$0xff]
  %v653 = vld [vmem:[#allocation2 + $0xe0] sm:$0xff]
  %v654 = vld [vmem:[#allocation2 + $0xe8] sm:$0xff]
  %v655 = vld [vmem:[#allocation2 + $0xf0] sm:$0xff]
  %v656 = vld [vmem:[#allocation2 + $0xf8] sm:$0xff]
  %v657 = vld [vmem:[#allocation2 + $0x100] sm:$0xff]
  %v658 = vld [vmem:[#allocation2 + $0x108] sm:$0xff]
  %v659 = vld [vmem:[#allocation2 + $0x110] sm:$0xff]
  %v660 = vld [vmem:[#allocation2 + $0x118] sm:$0xff]
  %v661 = vld [vmem:[#allocation2 + $0x120] sm:$0xff]
  %v662 = vld [vmem:[#allocation2 + $0x128] sm:$0xff]
  %v663 = vld [vmem:[#allocation2 + $0x130] sm:$0xff]
  %v664 = vld [vmem:[#allocation2 + $0x138] sm:$0xff]
  %v665 = vld [vmem:[#allocation2 + $0x140] sm:$0xff]
  %v666 = vld [vmem:[#allocation2 + $0x148] sm:$0xff]
  %v667 = vld [vmem:[#allocation2 + $0x150] sm:$0xff]
  %v668 = vld [vmem:[#allocation2 + $0x158] sm:$0xff]
  %v669 = vld [vmem:[#allocation2 + $0x160] sm:$0xff]
  %v670 = vld [vmem:[#allocation2 + $0x168] sm:$0xff]
  %v671 = vld [vmem:[#allocation2 + $0x170] sm:$0xff]
  %v672 = vld [vmem:[#allocation2 + $0x178] sm:$0xff]
  %v673 = vld [vmem:[#allocation2 + $0x180] sm:$0xff]
  %v674 = vld [vmem:[#allocation2 + $0x188] sm:$0xff]
  %v675 = vld [vmem:[#allocation2 + $0x190] sm:$0xff]
  %v676 = vld [vmem:[#allocation2 + $0x198] sm:$0xff]
  %v677 = vld [vmem:[#allocation2 + $0x1a0] sm:$0xff]
  %v678 = vld [vmem:[#allocation2 + $0x1a8] sm:$0xff]
  %v679 = vld [vmem:[#allocation2 + $0x1b0] sm:$0xff]
  %v680 = vld [vmem:[#allocation2 + $0x1b8] sm:$0xff]
  %v681 = vld [vmem:[#allocation2 + $0x1c0] sm:$0xff]
  %v682 = vld [vmem:[#allocation2 + $0x1c8] sm:$0xff]
  %v683 = vld [vmem:[#allocation2 + $0x1d0] sm:$0xff]
  %v684 = vld [vmem:[#allocation2 + $0x1d8] sm:$0xff]
  %v685 = vld [vmem:[#allocation2 + $0x1e0] sm:$0xff]
  %v686 = vld [vmem:[#allocation2 + $0x1e8] sm:$0xff]
  %v687 = vld [vmem:[#allocation2 + $0x1f0] sm:$0xff]
  %v688 = vld [vmem:[#allocation2 + $0x1f8] sm:$0xff]
  %v689 = vld [vmem:[%s3] sm:$0x1]
  %690 = vmatprep.subr.bf16.mxu0 0
  %691 = vmatpush1.bf16.msra.mxu0 %v625
  %692 = vmatprep.subr.bf16.mxu0 0
  %693 = vmatpush1.bf16.msra.mxu0 %v626
  %694 = vmatprep.subr.bf16.mxu0 0
  %695 = vmatpush1.bf16.msra.mxu0 %v627
  %696 = vmatprep.subr.bf16.mxu0 0
  %697 = vmatpush1.bf16.msra.mxu0 %v628
  %698 = vmatprep.subr.bf16.mxu0 0
  %699 = vmatpush1.bf16.msra.mxu0 %v629
  %700 = vmatprep.subr.bf16.mxu0 0
  %701 = vmatpush1.bf16.msra.mxu0 %v630
  %702 = vmatprep.subr.bf16.mxu0 0
  %703 = vmatpush1.bf16.msra.mxu0 %v631
  %704 = vmatprep.subr.bf16.mxu0 0
  %705 = vmatpush1.bf16.msra.mxu0 %v632
  %706 = vmatprep.subr.bf16.mxu0 0
  %707 = vmatpush1.bf16.msra.mxu0 %v633
  %708 = vmatprep.subr.bf16.mxu0 0
  %709 = vmatpush1.bf16.msra.mxu0 %v634
  %710 = vmatprep.subr.bf16.mxu0 0
  %711 = vmatpush1.bf16.msra.mxu0 %v635
  %712 = vmatprep.subr.bf16.mxu0 0
  %713 = vmatpush1.bf16.msra.mxu0 %v636
  %714 = vmatprep.subr.bf16.mxu0 0
  %715 = vmatpush1.bf16.msra.mxu0 %v637
  %716 = vmatprep.subr.bf16.mxu0 0
  %717 = vmatpush1.bf16.msra.mxu0 %v638
  %718 = vmatprep.subr.bf16.mxu0 0
  %719 = vmatpush1.bf16.msra.mxu0 %v639
  %720 = vmatprep.subr.bf16.mxu0 0
  %721 = vmatpush1.bf16.msra.mxu0 %v640
  %722 = vmatprep.mubr.bf16.mxu0 %v614
  %723 = vmatmul.mubr.bf16.gmra.mrb[0].mxu0 %v613
  %v724 = vpop.f32.mrb[0].mxu0
  %v725 = vadd.f32 %v689, %v724
  %v726 = vpop.f32.mrb[0].mxu0
  %v727 = vpop.f32.mrb[0].mxu0
  %v728 = vpop.f32.mrb[0].mxu0
  %729 = vdwg.mxu0
  %730 = vmatprep.subr.bf16.mxu0 0
  %731 = vmatpush1.bf16.msra.mxu0 %v641
  %732 = vmatprep.subr.bf16.mxu0 0
  %733 = vmatpush1.bf16.msra.mxu0 %v642
  %734 = vmatprep.subr.bf16.mxu0 0
  %735 = vmatpush1.bf16.msra.mxu0 %v643
  %736 = vmatprep.subr.bf16.mxu0 0
  %737 = vmatpush1.bf16.msra.mxu0 %v644
  %738 = vmatprep.subr.bf16.mxu0 0
  %739 = vmatpush1.bf16.msra.mxu0 %v645
  %740 = vmatprep.subr.bf16.mxu0 0
  %741 = vmatpush1.bf16.msra.mxu0 %v646
  %742 = vmatprep.subr.bf16.mxu0 0
  %743 = vmatpush1.bf16.msra.mxu0 %v647
  %744 = vmatprep.subr.bf16.mxu0 0
  %745 = vmatpush1.bf16.msra.mxu0 %v648
  %746 = vmatprep.subr.bf16.mxu0 0
  %747 = vmatpush1.bf16.msra.mxu0 %v649
  %748 = vmatprep.subr.bf16.mxu0 0
  %749 = vmatpush1.bf16.msra.mxu0 %v650
  %750 = vmatprep.subr.bf16.mxu0 0
  %751 = vmatpush1.bf16.msra.mxu0 %v651
  %752 = vmatprep.subr.bf16.mxu0 0
  %753 = vmatpush1.bf16.msra.mxu0 %v652
  %754 = vmatprep.subr.bf16.mxu0 0
  %755 = vmatpush1.bf16.msra.mxu0 %v653
  %756 = vmatprep.subr.bf16.mxu0 0
  %757 = vmatpush1.bf16.msra.mxu0 %v654
  %758 = vmatprep.subr.bf16.mxu0 0
  %759 = vmatpush1.bf16.msra.mxu0 %v655
  %760 = vmatprep.subr.bf16.mxu0 0
  %761 = vmatpush1.bf16.msra.mxu0 %v656
  %762 = vmatprep.mubr.bf16.mxu0 %v616
  %763 = vmatmul.mubr.bf16.gmra.mrb[0].mxu0 %v615
  %v764 = vpop.f32.mrb[0].mxu0
  %v765 = vadd.f32 %v725, %v764
  %v766 = vpop.f32.mrb[0].mxu0
  %v767 = vpop.f32.mrb[0].mxu0
  %v768 = vpop.f32.mrb[0].mxu0
  %769 = vdwg.mxu0
  %770 = vmatprep.subr.bf16.mxu0 0
  %771 = vmatpush1.bf16.msra.mxu0 %v657
  %772 = vmatprep.subr.bf16.mxu0 0
  %773 = vmatpush1.bf16.msra.mxu0 %v658
  %774 = vmatprep.subr.bf16.mxu0 0
  %775 = vmatpush1.bf16.msra.mxu0 %v659
  %776 = vmatprep.subr.bf16.mxu0 0
  %777 = vmatpush1.bf16.msra.mxu0 %v660
  %778 = vmatprep.subr.bf16.mxu0 0
  %779 = vmatpush1.bf16.msra.mxu0 %v661
  %780 = vmatprep.subr.bf16.mxu0 0
  %781 = vmatpush1.bf16.msra.mxu0 %v662
  %782 = vmatprep.subr.bf16.mxu0 0
  %783 = vmatpush1.bf16.msra.mxu0 %v663
  %784 = vmatprep.subr.bf16.mxu0 0
  %785 = vmatpush1.bf16.msra.mxu0 %v664
  %786 = vmatprep.subr.bf16.mxu0 0
  %787 = vmatpush1.bf16.msra.mxu0 %v665
  %788 = vmatprep.subr.bf16.mxu0 0
  %789 = vmatpush1.bf16.msra.mxu0 %v666
  %790 = vmatprep.subr.bf16.mxu0 0
  %791 = vmatpush1.bf16.msra.mxu0 %v667
  %792 = vmatprep.subr.bf16.mxu0 0
  %793 = vmatpush1.bf16.msra.mxu0 %v668
  %794 = vmatprep.subr.bf16.mxu0 0
  %795 = vmatpush1.bf16.msra.mxu0 %v669
  %796 = vmatprep.subr.bf16.mxu0 0
  %797 = vmatpush1.bf16.msra.mxu0 %v670
  %798 = vmatprep.subr.bf16.mxu0 0
  %799 = vmatpush1.bf16.msra.mxu0 %v671
  %800 = vmatprep.subr.bf16.mxu0 0
  %801 = vmatpush1.bf16.msra.mxu0 %v672
  %802 = vmatprep.mubr.bf16.mxu0 %v618
  %803 = vmatmul.mubr.bf16.gmra.mrb[0].mxu0 %v617
  %v804 = vpop.f32.mrb[0].mxu0
  %v805 = vadd.f32 %v765, %v804
  %v806 = vpop.f32.mrb[0].mxu0
  %v807 = vpop.f32.mrb[0].mxu0
  %v808 = vpop.f32.mrb[0].mxu0
  %809 = vdwg.mxu0
  %810 = vmatprep.subr.bf16.mxu0 0
  %811 = vmatpush1.bf16.msra.mxu0 %v673
  %812 = vmatprep.subr.bf16.mxu0 0
  %813 = vmatpush1.bf16.msra.mxu0 %v674
  %814 = vmatprep.subr.bf16.mxu0 0
  %815 = vmatpush1.bf16.msra.mxu0 %v675
  %816 = vmatprep.subr.bf16.mxu0 0
  %817 = vmatpush1.bf16.msra.mxu0 %v676
  %818 = vmatprep.subr.bf16.mxu0 0
  %819 = vmatpush1.bf16.msra.mxu0 %v677
  %820 = vmatprep.subr.bf16.mxu0 0
  %821 = vmatpush1.bf16.msra.mxu0 %v678
  %822 = vmatprep.subr.bf16.mxu0 0
  %823 = vmatpush1.bf16.msra.mxu0 %v679
  %824 = vmatprep.subr.bf16.mxu0 0
  %825 = vmatpush1.bf16.msra.mxu0 %v680
  %826 = vmatprep.subr.bf16.mxu0 0
  %827 = vmatpush1.bf16.msra.mxu0 %v681
  %828 = vmatprep.subr.bf16.mxu0 0
  %829 = vmatpush1.bf16.msra.mxu0 %v682
  %830 = vmatprep.subr.bf16.mxu0 0
  %831 = vmatpush1.bf16.msra.mxu0 %v683
  %832 = vmatprep.subr.bf16.mxu0 0
  %833 = vmatpush1.bf16.msra.mxu0 %v684
  %834 = vmatprep.subr.bf16.mxu0 0
  %835 = vmatpush1.bf16.msra.mxu0 %v685
  %836 = vmatprep.subr.bf16.mxu0 0
  %837 = vmatpush1.bf16.msra.mxu0 %v686
  %838 = vmatprep.subr.bf16.mxu0 0
  %839 = vmatpush1.bf16.msra.mxu0 %v687
  %840 = vmatprep.subr.bf16.mxu0 0
  %841 = vmatpush1.bf16.msra.mxu0 %v688
  %842 = vmatprep.mubr.bf16.mxu0 %v620
  %843 = vmatmul.mubr.bf16.gmra.mrb[0].mxu0 %v619
  %v844 = vpop.f32.mrb[0].mxu0
  %v845 = vadd.f32 %v805, %v844
  %v846 = vpop.f32.mrb[0].mxu0
  %v847 = vpop.f32.mrb[0].mxu0
  %v848 = vpop.f32.mrb[0].mxu0
  %849 = vdwg.mxu0
  %v850 = vmax.f32 %v845, 0.0
  %v851 = vpack.c.bf16 %v850, %v850
  %v852 = vld [vmem:[%s4] sm:$0xf]
  %v853 = vld [vmem:[%s4 + $0x4] sm:$0xf]
  %v854 = vld [vmem:[%s4 + $0x8] sm:$0xf]
  %v855 = vld [vmem:[%s4 + $0xc] sm:$0xf]
  %v856 = vld [vmem:[%s4 + $0x10] sm:$0xf]
  %v857 = vld [vmem:[%s4 + $0x14] sm:$0xf]
  %v858 = vld [vmem:[%s4 + $0x18] sm:$0xf]
  %v859 = vld [vmem:[%s4 + $0x1c] sm:$0xf]
  %v860 = vld [vmem:[%s4 + $0x20] sm:$0xf]
  %v861 = vld [vmem:[%s4 + $0x24] sm:$0xf]
  %v862 = vld [vmem:[%s4 + $0x28] sm:$0xf]
  %v863 = vld [vmem:[%s4 + $0x2c] sm:$0xf]
  %v864 = vld [vmem:[%s4 + $0x30] sm:$0xf]
  %v865 = vld [vmem:[%s4 + $0x34] sm:$0xf]
  %v866 = vld [vmem:[%s4 + $0x38] sm:$0xf]
  %v867 = vld [vmem:[%s4 + $0x3c] sm:$0xf]
  %v868 = vld [vmem:[%s3 + $0x1] sm:$0x1]
  %v885 = vunpack.c.l.b16 %v852
  %v886 = vunpack.c.l.b16 %v853
  %v887 = vunpack.c.l.b16 %v854
  %v888 = vunpack.c.l.b16 %v855
  %v889 = vunpack.c.l.b16 %v856
  %v890 = vunpack.c.l.b16 %v857
  %v891 = vunpack.c.l.b16 %v858
  %v892 = vunpack.c.l.b16 %v859
  %v893 = vunpack.c.l.b16 %v860
  %v894 = vunpack.c.l.b16 %v861
  %v895 = vunpack.c.l.b16 %v862
  %v896 = vunpack.c.l.b16 %v863
  %v897 = vunpack.c.l.b16 %v864
  %v898 = vunpack.c.l.b16 %v865
  %v899 = vunpack.c.l.b16 %v866
  %v900 = vunpack.c.l.b16 %v867
  %v901 = vpack.c.b16 %v886, %v885
  %v902 = vpack.c.b16 %v888, %v887
  %v903 = vpack.c.b16 %v890, %v889
  %v904 = vpack.c.b16 %v892, %v891
  %v905 = vpack.c.b16 %v894, %v893
  %v906 = vpack.c.b16 %v896, %v895
  %v907 = vpack.c.b16 %v898, %v897
  %v908 = vpack.c.b16 %v900, %v899
  %917 = vmatprep.subr.bf16.mxu0 0
  %918 = vmatpush1.bf16.msra.mxu0 %v901
  %919 = vmatprep.subr.bf16.mxu0 0
  %920 = vmatpush1.bf16.msra.mxu0 %v902
  %921 = vmatprep.subr.bf16.mxu0 0
  %922 = vmatpush1.bf16.msra.mxu0 %v903
  %923 = vmatprep.subr.bf16.mxu0 0
  %924 = vmatpush1.bf16.msra.mxu0 %v904
  %925 = vmatprep.subr.bf16.mxu0 0
  %926 = vmatpush1.bf16.msra.mxu0 %v905
  %927 = vmatprep.subr.bf16.mxu0 0
  %928 = vmatpush1.bf16.msra.mxu0 %v906
  %929 = vmatprep.subr.bf16.mxu0 0
  %930 = vmatpush1.bf16.msra.mxu0 %v907
  %931 = vmatprep.subr.bf16.mxu0 0
  %932 = vmatpush1.bf16.msra.mxu0 %v908
  %933 = vmatprep.subr.bf16.mxu0 0
  %934 = vmatpush1.bf16.msra.mxu0 0
  %935 = vmatprep.subr.bf16.mxu0 0
  %936 = vmatpush1.bf16.msra.mxu0 0
  %937 = vmatprep.subr.bf16.mxu0 0
  %938 = vmatpush1.bf16.msra.mxu0 0
  %939 = vmatprep.subr.bf16.mxu0 0
  %940 = vmatpush1.bf16.msra.mxu0 0
  %941 = vmatprep.subr.bf16.mxu0 0
  %942 = vmatpush1.bf16.msra.mxu0 0
  %943 = vmatprep.subr.bf16.mxu0 0
  %944 = vmatpush1.bf16.msra.mxu0 0
  %945 = vmatprep.subr.bf16.mxu0 0
  %946 = vmatpush1.bf16.msra.mxu0 0
  %947 = vmatprep.subr.bf16.mxu0 0
  %948 = vmatpush1.bf16.msra.mxu0 0
  %949 = vmatprep.mubr.bf16.mxu0 0
  %950 = vmatmul.mubr.bf16.gmra.mrb[0].mxu0 %v851
  %v951 = vpop.f32.mrb[0].mxu0
  %v952 = vadd.f32 %v868, %v951
  %v953 = vpop.f32.mrb[0].mxu0
  %v954 = vpop.f32.mrb[0].mxu0
  %v955 = vpop.f32.mrb[0].mxu0
  %956 = vdwg.mxu0
  %vm957 = vcmask 1040384
  %v958 = vsel %vm957, %v952, -inf
  %959 = vmax.xlane.f32.xlu0 %v958
  %v960 = vpop.xlane.xlu0 %959
  %v961 = vsub.f32 %v952, %v960
  %v962 = vmul.f32 %v961, 1.442695
  %v963 = vpow.pop %v962
  %v964 = vsel %vm957, %v963, 0.0
  %965 = vadd.xlane.f32.xlu0 %v964
  %v966 = vpop.xlane.xlu0 %965
  %v967 = vrcp.pop %v966
  %v968 = vmul.f32 %v963, %v967
  %969 = vst [vmem:[%s6] sm:$0x1] %v968
  // Predicated region
  $region56: #{prim_big_forward.1} parent=0 // pred_check
    _
  $region57: #{prim_big_forward.1} parent=0 // pred_check_branch
    %971 = sbr.rel (0) target = $region59
  $region58: #{prim_big_forward.1} parent=0 // pred_region
    _
  $region59: #{prim_big_forward.1} parent=0 // pred_fallthru
    _
  // Predicated region
  $region60: #{prim_big_forward.1} parent=0 // pred_check
    _
  $region61: #{prim_big_forward.1} parent=0 // pred_check_branch
    %973 = sbr.rel (0) target = $region63
  $region62: #{prim_big_forward.1} parent=0 // pred_region
    _
  $region63: #{prim_big_forward.1} parent=0 // pred_fallthru
    _
  %974 = vsyncmov [#allocation3]
  %s975 = vpop.sfrf %974
  %p976 = scmp.eq.s32.totalorder %s975, 0
  %p977 = pneg %p976
  %979 = shalt.err (%p977)

</llo_original>
